<compile_context>
chip_gen: v7x
topology: tpu7x:2x2x1
jax: 0.10.0
libtpu: 0.0.40
codegen_flags: <defaults>
</compile_context>

<pallas_src>
import functools

import jax
import jax.numpy as jnp
from jax.experimental import pallas as pl
from jax.experimental.pallas import tpu as pltpu

LANES = 128
MAX_TILE_ROWS = 1024  # (1024,128) f32 = 512 KiB/input; 2 inputs x 2 buffers = 2 MiB VMEM


def _bce_partial_kernel(n_rows, x_ref, y_ref, sum_ref, cnt_ref):
    """Writes per-block, per-lane partial loss sums and valid-element counts."""
    i = pl.program_id(0)
    block_rows = x_ref.shape[0]

    x = x_ref[...].astype(jnp.float32)
    y = y_ref[...].astype(jnp.float32)

    # Mask: (a) module semantics  y > -0.5, (b) rows past the true extent
    # (the grid-tail partial block may contain garbage rows beyond n_rows).
    row_ids = i * block_rows + jax.lax.broadcasted_iota(jnp.int32, x.shape, 0)
    valid = (row_ids < n_rows) & (y > -0.5)

    # Numerically stable BCE with logits: max(x,0) - x*y + log1p(exp(-|x|)).
    per_elem = jnp.maximum(x, 0.0) - x * y + jnp.log1p(jnp.exp(-jnp.abs(x)))
    per_elem = jnp.where(valid, per_elem, 0.0)

    # Per-lane partials only (vreg adds + one sublane reduce); the tiny
    # cross-lane / cross-block reduction + divide happen outside the kernel.
    sum_ref[0] = jnp.sum(per_elem, axis=0, keepdims=True)
    cnt_ref[0] = jnp.sum(valid.astype(jnp.int32), axis=0, keepdims=True)


def custom_bce_with_logits_loss(y_hat, y):
    """Masked-mean BCEWithLogits over elements where y > -0.5. Returns scalar f32."""
    # Keep native dtypes (bf16 stays bf16 in HBM); cast to f32 inside the kernel.
    x_flat = jnp.ravel(y_hat)
    y_flat = jnp.ravel(y)
    n = x_flat.shape[0]

    # Only pad to the next lane multiple (usually a no-op for NN shapes); padded
    # targets are -1 so they are excluded by the y > -0.5 mask.
    rem = (-n) % LANES
    if rem:
        x_flat = jnp.pad(x_flat, (0, rem))
        y_flat = jnp.pad(y_flat, (0, rem), constant_values=-1)

    rows = x_flat.shape[0] // LANES
    x2d = x_flat.reshape(rows, LANES)
    y2d = y_flat.reshape(rows, LANES)

    # Full extent when small (always legal), else a multiple of 8.
    tile_rows = min(MAX_TILE_ROWS, rows)
    num_blocks = pl.cdiv(rows, tile_rows)

    sums, cnts = pl.pallas_call(
        functools.partial(_bce_partial_kernel, rows),
        out_shape=(
            jax.ShapeDtypeStruct((num_blocks, 1, LANES), jnp.float32),
            jax.ShapeDtypeStruct((num_blocks, 1, LANES), jnp.int32),
        ),
        grid=(num_blocks,),
        in_specs=[
            pl.BlockSpec((tile_rows, LANES), lambda i: (i, 0)),
            pl.BlockSpec((tile_rows, LANES), lambda i: (i, 0)),
        ],
        out_specs=(
            pl.BlockSpec((1, 1, LANES), lambda i: (i, 0, 0)),
            pl.BlockSpec((1, 1, LANES), lambda i: (i, 0, 0)),
        ),
        compiler_params=pltpu.CompilerParams(
            # Per-block independent partials -> safe to shard across TCs (v7x).
            dimension_semantics=("parallel",),
        ),
    )(x2d, y2d)

    total = jnp.sum(sums)
    count = jnp.sum(cnts).astype(jnp.float32)
    # NOTE: if every target is ignored (count == 0) this yields NaN, matching
    # PyTorch's mean over an empty selection.
    return total / count


if __name__ == "__main__":
    key = jax.random.PRNGKey(0)
    k1, k2, k3 = jax.random.split(key, 3)

    # Small shape consistent with a segmentation-style use: NCHW logits/targets.
    shape = (2, 4, 16, 16)
    y_hat = jax.random.normal(k1, shape, dtype=jnp.float32)
    # Targets in {0, 1}, with some positions set to -1 ("ignore") so the
    # y > -0.5 filtering is exercised.
    y = jax.random.bernoulli(k2, 0.5, shape).astype(jnp.float32)
    ignore = jax.random.bernoulli(k3, 0.25, shape)
    y = jnp.where(ignore, -1.0, y)

    loss = custom_bce_with_logits_loss(y_hat, y)
    loss = jax.block_until_ready(loss)

    # Pure-JAX reference check (glue, not part of the kernel path).
    xf = y_hat.ravel().astype(jnp.float32)
    yf = y.ravel().astype(jnp.float32)
    m = yf > -0.5
    per = jnp.maximum(xf, 0.0) - xf * yf + jnp.log1p(jnp.exp(-jnp.abs(xf)))
    ref = jnp.sum(jnp.where(m, per, 0.0)) / jnp.sum(m.astype(jnp.float32))
    assert jnp.allclose(loss, ref, rtol=1e-5, atol=1e-6), (loss, ref)

    print("KERNEL_OK")
</pallas_src>

<mosaic_0001>
module attributes {stable_mosaic.version = 11 : i64} {
  func.func @_bce_partial_kernel(%arg0: i32, %arg1: memref<16x128xf32, #tpu.memory_space<vmem>>, %arg2: memref<16x128xf32, #tpu.memory_space<vmem>>, %arg3: memref<1x1x128xf32, #tpu.memory_space<vmem>>, %arg4: memref<1x1x128xi32, #tpu.memory_space<vmem>>) attributes {dimension_semantics = [#tpu.dimension_semantics<parallel>], iteration_bounds = array<i64: 1>, scalar_prefetch = 0 : i64, scratch_operands = 0 : i64, tpu.core_type = #tpu.core_type<tc>, window_params = [{transform_indices = @transform_0, window_bounds = array<i64: 16, 128>}, {transform_indices = @transform_1, window_bounds = array<i64: 16, 128>}, {transform_indices = @transform_2, window_bounds = array<i64: 1, 1, 128>}, {transform_indices = @transform_3, window_bounds = array<i64: 1, 1, 128>}]} {
    %c0 = arith.constant 0 : index
    %c0_0 = arith.constant 0 : index
    %0 = vector.load %arg1[%c0, %c0_0] : memref<16x128xf32, #tpu.memory_space<vmem>>, vector<16x128xf32>
    %c0_1 = arith.constant 0 : index
    %c0_2 = arith.constant 0 : index
    %1 = vector.load %arg2[%c0_1, %c0_2] : memref<16x128xf32, #tpu.memory_space<vmem>>, vector<16x128xf32>
    %c16_i32 = arith.constant 16 : i32
    %2 = arith.muli %arg0, %c16_i32 : i32
    %3 = tpu.iota {dimensions = array<i32: 0>} : vector<16x128xi32>
    %4 = vector.broadcast %2 : i32 to vector<16x128xi32>
    %5 = arith.addi %4, %3 : vector<16x128xi32>
    %c16_i32_3 = arith.constant 16 : i32
    %6 = vector.broadcast %c16_i32_3 : i32 to vector<16x128xi32>
    %7 = arith.cmpi slt, %5, %6 : vector<16x128xi32>
    %cst = arith.constant -5.000000e-01 : f32
    %8 = vector.broadcast %cst : f32 to vector<16x128xf32>
    %9 = arith.cmpf ogt, %1, %8 : vector<16x128xf32>
    %10 = arith.andi %7, %9 : vector<16x128xi1>
    %cst_4 = arith.constant 0.000000e+00 : f32
    %11 = vector.broadcast %cst_4 : f32 to vector<16x128xf32>
    %12 = arith.maximumf %0, %11 : vector<16x128xf32>
    %13 = arith.mulf %0, %1 : vector<16x128xf32>
    %14 = arith.subf %12, %13 : vector<16x128xf32>
    %15 = math.absf %0 : vector<16x128xf32>
    %cst_5 = arith.constant 0.000000e+00 : f32
    %16 = vector.broadcast %cst_5 : f32 to vector<16x128xf32>
    %17 = arith.subf %16, %15 : vector<16x128xf32>
    %18 = math.exp %17 : vector<16x128xf32>
    %19 = math.log1p %18 : vector<16x128xf32>
    %20 = arith.addf %14, %19 : vector<16x128xf32>
    %cst_6 = arith.constant 0.000000e+00 : f32
    %21 = vector.broadcast %cst_6 : f32 to vector<16x128xf32>
    %22 = arith.select %10, %20, %21 : vector<16x128xi1>, vector<16x128xf32>
    %cst_7 = arith.constant dense<0.000000e+00> : vector<128xf32>
    %23 = vector.multi_reduction <add>, %22, %cst_7 [0] : vector<16x128xf32> to vector<128xf32>
    %24 = vector.shape_cast %23 : vector<128xf32> to vector<1x128xf32>
    %c0_8 = arith.constant 0 : index
    %c0_9 = arith.constant 0 : index
    %c0_10 = arith.constant 0 : index
    %25 = vector.load %arg3[%c0_8, %c0_9, %c0_10] : memref<1x1x128xf32, #tpu.memory_space<vmem>>, vector<1x1x128xf32>
    %26 = vector.shape_cast %25 : vector<1x1x128xf32> to vector<1x128xf32>
    %27 = vector.shape_cast %24 : vector<1x128xf32> to vector<1x1x128xf32>
    tpu.vector_store %arg3[%c0_8, %c0_9, %c0_10], %27 {strides = array<i32>} : memref<1x1x128xf32, #tpu.memory_space<vmem>>, vector<1x1x128xf32>,
    %28 = arith.extui %10 : vector<16x128xi1> to vector<16x128xi32>
    %cst_11 = arith.constant dense<0> : vector<128xi32>
    %29 = vector.multi_reduction <add>, %28, %cst_11 [0] : vector<16x128xi32> to vector<128xi32>
    %30 = vector.shape_cast %29 : vector<128xi32> to vector<1x128xi32>
    %c0_12 = arith.constant 0 : index
    %c0_13 = arith.constant 0 : index
    %c0_14 = arith.constant 0 : index
    %31 = vector.load %arg4[%c0_12, %c0_13, %c0_14] : memref<1x1x128xi32, #tpu.memory_space<vmem>>, vector<1x1x128xi32>
    %32 = vector.shape_cast %31 : vector<1x1x128xi32> to vector<1x128xi32>
    %33 = vector.shape_cast %30 : vector<1x128xi32> to vector<1x1x128xi32>
    tpu.vector_store %arg4[%c0_12, %c0_13, %c0_14], %33 {strides = array<i32>} : memref<1x1x128xi32, #tpu.memory_space<vmem>>, vector<1x1x128xi32>,
    return
  }
  func.func @transform_0(%arg0: i32) -> (i32, i32) {
    %c0_i32 = arith.constant 0 : i32
    %c0_i32_0 = arith.constant 0 : i32
    return %arg0, %c0_i32 : i32, i32
  }
  func.func @transform_1(%arg0: i32) -> (i32, i32) {
    %c0_i32 = arith.constant 0 : i32
    %c0_i32_0 = arith.constant 0 : i32
    return %arg0, %c0_i32 : i32, i32
  }
  func.func @transform_2(%arg0: i32) -> (i32, i32, i32) {
    %c0_i32 = arith.constant 0 : i32
    %c0_i32_0 = arith.constant 0 : i32
    %c0_i32_1 = arith.constant 0 : i32
    return %arg0, %c0_i32, %c0_i32_0 : i32, i32, i32
  }
  func.func @transform_3(%arg0: i32) -> (i32, i32, i32) {
    %c0_i32 = arith.constant 0 : i32
    %c0_i32_0 = arith.constant 0 : i32
    %c0_i32_1 = arith.constant 0 : i32
    return %arg0, %c0_i32, %c0_i32_0 : i32, i32, i32
  }
}

</mosaic_0001>

<llo_original>
// kernel: tpu_custom_call.1
$region0: #{tpu_custom_call.1}
  #allocation0 [shape = 'u32[]', space=smem, size = 0x4, offset = 0x4, fixed_abs, tag = 'smem constant byte address 0x4 - core index']
  #allocation1 [shape = 'u32[144,128]{1,0:T(1,128)}', space=vmem, size = 0x12000, scoped, tag = 'internal scratch']
  %s0 = inlined_call_operand.hbm [shape: f32[16,128], index: 0, kind: input, shape index: {}]
  %s1 = inlined_call_operand.hbm [shape: f32[16,128], index: 1, kind: input, shape index: {}]
  %s2 = inlined_call_operand.hbm [shape: f32[1,1,128], index: 2, kind: output, shape index: {0}]
  %s3 = inlined_call_operand.hbm [shape: s32[1,1,128], index: 3, kind: output, shape index: {1}]
  %4 = xla_tuple %s2, %s3
  %s5 = sld [smem:[#allocation0]]
  $region34: #{tpu_custom_call.1} parent=0
    _
  %s7 = ssub.s32 1, %s5
  %s8 = scalar_select 0, %s7, %s5
  $region1: #{tpu_custom_call.1} parent=0
    #allocation2 [shape = 'u8[8192]{0}', space=vmem, size = 0x2000, scoped, tag = 'input window, operand 0, single buffered']
    #allocation3 [shape = 's32[1]{0}', space=sflag, size = 0x4, scoped, tag = 'scoped memory for tpu_custom_call.1']
    #allocation4 [shape = 's32[1]{0}', space=sflag, size = 0x4, scoped, tag = 'scoped memory for tpu_custom_call.1']
    #allocation5 [shape = 'u8[8192]{0}', space=vmem, size = 0x2000, scoped, tag = 'input window, operand 1, single buffered']
    #allocation6 [shape = 's32[1]{0}', space=sflag, size = 0x4, scoped, tag = 'scoped memory for tpu_custom_call.1']
    #allocation7 [shape = 'u8[512]{0}', space=vmem, size = 0x400, scoped, tag = 'output window, operand 0, single buffered']
    #allocation8 [shape = 'u8[512]{0}', space=vmem, size = 0x400, scoped, tag = 'output window, operand 1, single buffered']
    #allocation9 [shape = 's32[1]{0}', space=sflag, size = 0x4, scoped, tag = 'scoped memory for tpu_custom_call.1']
    %9 = vsyncpa [#allocation3], 0
    %10 = vsyncpa [#allocation6], 0
    %11 = vsyncpa [#allocation4], 0
    %12 = vsyncpa [#allocation9], 0
    // Predicated region
    $region2: #{tpu_custom_call.1} parent=1 // pred_check
      _
    $region3: #{tpu_custom_call.1} parent=1 // pred_check_branch
      %14 = sbr.rel (0) target = $region5
    $region4: #{tpu_custom_call.1} parent=1 // pred_region
      %s16 = ssub.s32 256, 256
      %17 = vsyncadd [#allocation3], %s16
      %s18 = sshll.u32 [#allocation2], 4
      %s19 = int_to_ptr.vmem [resolvable:$true] %s18
      %24 = dma.hbm_to_vmem [thread:$0]  %s0, 256, %s19, [#allocation3], 128, 128, 8
    $region5: #{tpu_custom_call.1} parent=1 // pred_fallthru
      _
    // Predicated region
    $region6: #{tpu_custom_call.1} parent=1 // pred_check
      _
    $region7: #{tpu_custom_call.1} parent=1 // pred_check_branch
      %26 = sbr.rel (0) target = $region9
    $region8: #{tpu_custom_call.1} parent=1 // pred_region
      %s28 = ssub.s32 256, 256
      %29 = vsyncadd [#allocation6], %s28
      %s30 = sshll.u32 [#allocation5], 4
      %s31 = int_to_ptr.vmem [resolvable:$true] %s30
      %36 = dma.hbm_to_vmem [thread:$0]  %s1, 256, %s31, [#allocation6], 128, 128, 8
    $region9: #{tpu_custom_call.1} parent=1 // pred_fallthru
      _
    // Predicated region
    $region10: #{tpu_custom_call.1} parent=1 // pred_check
      _
    $region11: #{tpu_custom_call.1} parent=1 // pred_check_branch
      %38 = sbr.rel (0) target = $region13
    $region12: #{tpu_custom_call.1} parent=1 // pred_region
      %39 = dma.done [#allocation3], 256
    $region13: #{tpu_custom_call.1} parent=1 // pred_fallthru
      _
    // Predicated region
    $region14: #{tpu_custom_call.1} parent=1 // pred_check
      _
    $region15: #{tpu_custom_call.1} parent=1 // pred_check_branch
      %41 = sbr.rel (0) target = $region17
    $region16: #{tpu_custom_call.1} parent=1 // pred_region
      %42 = dma.done [#allocation6], 256
    $region17: #{tpu_custom_call.1} parent=1 // pred_fallthru
      _
    %v43 = vld [vmem:[#allocation2] sm:$0xff]
    %v44 = vld [vmem:[#allocation2 + $0x8] sm:$0xff]
    %v45 = vld [vmem:[#allocation5] sm:$0xff]
    %v46 = vld [vmem:[#allocation5 + $0x8] sm:$0xff]
    %s47 = smul.u32 0, 16
    %v48 = vlaneseq
    %v49 = vshrl.u32 %v48, 7
    %v50 = vadd.s32 %v49, 8
    %v51 = vstv %s47
    %v52 = vadd.s32 %v51, %v49
    %v53 = vadd.s32 %v51, %v50
    %vm54 = vcmp.lt.s32.totalorder %v52, 16
    %vm55 = vcmp.lt.s32.totalorder %v53, 16
    %vm56 = vcmp.gt.f32.partialorder %v45, -0.5
    %vm57 = vcmp.gt.f32.partialorder %v46, -0.5
    %vm58 = vmand %vm54, %vm56
    %vm59 = vmand %vm55, %vm57
    %v60 = vmax.f32 %v43, 0.0
    %v61 = vmax.f32 %v44, 0.0
    %v62 = vmul.f32 %v43, %v45
    %v63 = vmul.f32 %v44, %v46
    %v64 = vsub.f32 %v60, %v62
    %v65 = vsub.f32 %v61, %v63
    %v66 = vand.u32 2147483647, %v43
    %v67 = vand.u32 2147483647, %v44
    %v68 = vsub.f32 0.0, %v66
    %v69 = vsub.f32 0.0, %v67
    %v70 = vmul.f32 %v68, 1.442695
    %v71 = vpow.pop %v70
    %v72 = vmul.f32 %v69, 1.442695
    %v73 = vpow.pop %v72
    %v74 = vadd.f32 %v71, 1.0
    %v75 = vlog2.pop %v74
    %v76 = vmul.f32 %v75, 0.6931472
    %v77 = vmul.f32 -0.5, %v71
    %v78 = vadd.f32 %v77, 1.0
    %v79 = vmul.f32 %v78, %v71
    %v80 = vand.u32 2147483647, %v71
    %vm81 = vcmp.lt.f32.partialorder %v80, 0.0004427343
    %v82 = vsel %vm81, %v79, %v76
    %v83 = vadd.f32 %v73, 1.0
    %v84 = vlog2.pop %v83
    %v85 = vmul.f32 %v84, 0.6931472
    %v86 = vmul.f32 -0.5, %v73
    %v87 = vadd.f32 %v86, 1.0
    %v88 = vmul.f32 %v87, %v73
    %v89 = vand.u32 2147483647, %v73
    %vm90 = vcmp.lt.f32.partialorder %v89, 0.0004427343
    %v91 = vsel %vm90, %v88, %v85
    %v92 = vadd.f32 %v64, %v82
    %v93 = vadd.f32 %v65, %v91
    %v94 = vsel %vm58, %v92, 0.0
    %v95 = vsel %vm59, %v93, 0.0
    %v96 = vadd.f32 %v94, %v95
    %v97 = vrot.slane %v96, 4
    %v98 = vadd.f32 %v96, %v97
    %v99 = vrot.slane %v98, 2
    %v100 = vadd.f32 %v98, %v99
    %v101 = vrot.slane %v100, 1
    %v102 = vadd.f32 %v100, %v101
    %103 = vst [vmem:[#allocation7] sm:$0x1] %v102
    %v104 = vsel %vm58, 1, 0
    %v105 = vsel %vm59, 1, 0
    %v106 = vadd.s32 %v104, %v105
    %v107 = vrot.slane %v106, 4
    %v108 = vadd.s32 %v106, %v107
    %v109 = vrot.slane %v108, 2
    %v110 = vadd.s32 %v108, %v109
    %v111 = vrot.slane %v110, 1
    %v112 = vadd.s32 %v110, %v111
    %113 = vst [vmem:[#allocation8] sm:$0x1] %v112
    // Predicated region
    $region18: #{tpu_custom_call.1} parent=1 // pred_check
      _
    $region19: #{tpu_custom_call.1} parent=1 // pred_check_branch
      %115 = sbr.rel (0) target = $region21
    $region20: #{tpu_custom_call.1} parent=1 // pred_region
      %s117 = ssub.s32 16, 16
      %118 = vsyncadd [#allocation4], %s117
      %s120 = sshll.u32 [#allocation7], 4
      %s121 = int_to_ptr.vmem [resolvable:$true] %s120
      %123 = dma.vmem_to_hbm [thread:$0]  %s121, 16, %s2, [#allocation4]
    $region21: #{tpu_custom_call.1} parent=1 // pred_fallthru
      _
    // Predicated region
    $region22: #{tpu_custom_call.1} parent=1 // pred_check
      _
    $region23: #{tpu_custom_call.1} parent=1 // pred_check_branch
      %125 = sbr.rel (0) target = $region25
    $region24: #{tpu_custom_call.1} parent=1 // pred_region
      %s127 = ssub.s32 16, 16
      %128 = vsyncadd [#allocation9], %s127
      %s130 = sshll.u32 [#allocation8], 4
      %s131 = int_to_ptr.vmem [resolvable:$true] %s130
      %133 = dma.vmem_to_hbm [thread:$0]  %s131, 16, %s3, [#allocation9]
    $region25: #{tpu_custom_call.1} parent=1 // pred_fallthru
      _
    // Predicated region
    $region26: #{tpu_custom_call.1} parent=1 // pred_check
      _
    $region27: #{tpu_custom_call.1} parent=1 // pred_check_branch
      %135 = sbr.rel (0) target = $region29
    $region28: #{tpu_custom_call.1} parent=1 // pred_region
      %136 = dma.done [#allocation4], 16
    $region29: #{tpu_custom_call.1} parent=1 // pred_fallthru
      _
    // Predicated region
    $region30: #{tpu_custom_call.1} parent=1 // pred_check
      _
    $region31: #{tpu_custom_call.1} parent=1 // pred_check_branch
      %138 = sbr.rel (0) target = $region33
    $region32: #{tpu_custom_call.1} parent=1 // pred_region
      %139 = dma.done [#allocation9], 16
    $region33: #{tpu_custom_call.1} parent=1 // pred_fallthru
      _
    %140 = vsyncpa [#allocation3], 1
    %141 = vsyncpa [#allocation6], 1
    %142 = vsyncpa [#allocation4], 1
    %143 = vsyncpa [#allocation9], 1

</llo_original>
